<compile_context>
chip_gen: v7x
topology: tpu7x:2x2x1
jax: 0.10.0
libtpu: 0.0.40
codegen_flags: <defaults>
</compile_context>

<pallas_src>
import jax
import jax.numpy as jnp
import numpy as np
from jax.experimental import pallas as pl
from jax.experimental.pallas import tpu as pltpu


def _round_up(x, m):
    return (x + m - 1) // m * m


def dqn_kernel(x_ref, w1_ref, b1_ref, w2_ref, b2_ref, w3_ref, b3_ref, o_ref):
    x = x_ref[...]  # (TB, D_in), dtype == weight compute dtype (f32 or bf16)

    # fc1 + ReLU — accumulate in f32 regardless of operand dtype.
    h1 = jnp.dot(x, w1_ref[...], preferred_element_type=jnp.float32) + b1_ref[...]
    h1 = jnp.maximum(h1, 0.0)

    # fc2 + ReLU — MXU operands follow the weight dtype; elementwise stays f32.
    h2 = jnp.dot(h1.astype(w2_ref.dtype), w2_ref[...],
                 preferred_element_type=jnp.float32) + b2_ref[...]
    h2 = jnp.maximum(h2, 0.0)

    # fc3 logits — exactly D_out lanes wide, so no padded-lane masking needed.
    logits = jnp.dot(h2.astype(w3_ref.dtype), w3_ref[...],
                     preferred_element_type=jnp.float32) + b3_ref[...]

    # Numerically-stable, exactly-normalized softmax (exact divide: rows sum
    # to 1 to f32 precision — this fixed the previous tolerance failure).
    m = jnp.max(logits, axis=-1, keepdims=True)
    e = jnp.exp(logits - m)
    denom = jnp.sum(e, axis=-1, keepdims=True)
    o_ref[...] = (e / denom).astype(o_ref.dtype)


def prepare_params(params, compute_dtype=jnp.float32):
    """Pad weights once (hidden dim -> multiple of 128 lanes) and optionally
    cast MXU operands (the weights) to bf16.  Zero-padded hidden columns/rows
    are exact no-ops through Linear+ReLU.  Biases stay f32 (VPU math is f32)."""
    w1, b1 = params["w1"], params["b1"]
    w2, b2 = params["w2"], params["b2"]
    w3, b3 = params["w3"], params["b3"]
    H = w1.shape[1]
    H_pad = _round_up(H, 128)
    return {
        "w1": jnp.pad(w1, ((0, 0), (0, H_pad - H))).astype(compute_dtype),
        "b1": jnp.pad(b1, ((0, 0), (0, H_pad - H))).astype(jnp.float32),
        "w2": jnp.pad(w2, ((0, H_pad - H), (0, H_pad - H))).astype(compute_dtype),
        "b2": jnp.pad(b2, ((0, 0), (0, H_pad - H))).astype(jnp.float32),
        "w3": jnp.pad(w3, ((0, H_pad - H), (0, 0))).astype(compute_dtype),
        "b3": b3.astype(jnp.float32),
    }


def _choose_batch_tile(B, batch_tile):
    """Large tiles amortize the ~0.35us per-grid-step overhead; for large B
    keep >= 2 grid steps so v7x's two TensorCores (batch axis is "parallel")
    both get work.  Tiles are multiples of 128 rows (safe for f32 and bf16)."""
    batch_tile = max(128, (batch_tile // 128) * 128)
    if B <= 256:
        return B  # single block; block dim == full array dim is always legal
    half = _round_up(pl.cdiv(B, 2), 128)
    return min(batch_tile, half)


def dqn_forward(x, prep, *, batch_tile=1024):
    """x: (B, D_in) float32.  prep: output of prepare_params() — weights are
    pre-transposed to (in, out) and hidden-padded to 128 lanes."""
    w1, b1, w2, b2 = prep["w1"], prep["b1"], prep["w2"], prep["b2"]
    w3, b3 = prep["w3"], prep["b3"]
    B, D_in = x.shape
    H_pad = w1.shape[1]
    D_out = w3.shape[1]

    # bf16 MXU-operand path (v6e/v7x): halves the dominant streamed x bytes.
    x = x.astype(w1.dtype)

    TB = _choose_batch_tile(B, batch_tile)
    grid = (pl.cdiv(B, TB),)  # partial last block handled by Pallas (masked store)

    return pl.pallas_call(
        dqn_kernel,
        out_shape=jax.ShapeDtypeStruct((B, D_out), jnp.float32),
        grid=grid,
        in_specs=[
            pl.BlockSpec((TB, D_in), lambda i: (i, 0)),      # x streams over batch
            pl.BlockSpec((D_in, H_pad), lambda i: (0, 0)),   # weights/biases stay
            pl.BlockSpec((1, H_pad), lambda i: (0, 0)),      # resident in VMEM
            pl.BlockSpec((H_pad, H_pad), lambda i: (0, 0)),
            pl.BlockSpec((1, H_pad), lambda i: (0, 0)),
            pl.BlockSpec((H_pad, D_out), lambda i: (0, 0)),
            pl.BlockSpec((1, D_out), lambda i: (0, 0)),
        ],
        out_specs=pl.BlockSpec((TB, D_out), lambda i: (i, 0)),  # un-padded store
        compiler_params=pltpu.CompilerParams(
            dimension_semantics=("parallel",),  # v7x: split batch grid across TCs
        ),
    )(x, w1, b1, w2, b2, w3, b3)


def init_params(key, D_in, D_out, H=25):
    """Deterministic init mimicking torch.nn.Linear default (U[-1/sqrt(fan_in), +])."""
    ks = jax.random.split(key, 6)

    def lin(kw, kb, fan_in, fan_out):
        bound = 1.0 / np.sqrt(fan_in)
        w = jax.random.uniform(kw, (fan_in, fan_out), jnp.float32, -bound, bound)
        b = jax.random.uniform(kb, (1, fan_out), jnp.float32, -bound, bound)
        return w, b

    w1, b1 = lin(ks[0], ks[1], D_in, H)
    w2, b2 = lin(ks[2], ks[3], H, H)
    w3, b3 = lin(ks[4], ks[5], H, D_out)
    return {"w1": w1, "b1": b1, "w2": w2, "b2": b2, "w3": w3, "b3": b3}


def dqn_reference(x, p):
    h1 = jnp.maximum(x @ p["w1"] + p["b1"], 0.0)
    h2 = jnp.maximum(h1 @ p["w2"] + p["b2"], 0.0)
    return jax.nn.softmax(h2 @ p["w3"] + p["b3"], axis=-1)


if __name__ == "__main__":
    key = jax.random.PRNGKey(0)
    k_x, k_x2, k_p = jax.random.split(key, 3)

    B, D_in, D_out, H = 8, 32, 4, 25
    x = jax.random.normal(k_x, (B, D_in), dtype=jnp.float32)
    params = init_params(k_p, D_in, D_out, H)
    prep_f32 = prepare_params(params)  # exact f32 path

    # --- Small case (single grid step). ---
    out = jax.block_until_ready(dqn_forward(x, prep_f32))
    ref = jax.block_until_ready(dqn_reference(x, params))
    assert out.shape == (B, D_out)
    # Exact normalization check (softmax rows sum to 1 to f32 precision).
    np.testing.assert_allclose(np.asarray(out).sum(-1), np.ones(B), rtol=0, atol=1e-5)
    # Residual diffs vs. the XLA reference come from MXU f32 pass decomposition
    # vs. XLA's default matmul precision, not from any approximation.
    np.testing.assert_allclose(np.asarray(out), np.asarray(ref), rtol=1e-2, atol=1e-3)

    # --- Batched case: exercises the batch grid (>=2 steps), the partial last
    #     block (1000 % 512 != 0), and the resident weights. ---
    B2 = 1000
    x2 = jax.random.normal(k_x2, (B2, D_in), dtype=jnp.float32)
    out2 = jax.block_until_ready(dqn_forward(x2, prep_f32))
    ref2 = jax.block_until_ready(dqn_reference(x2, params))
    assert out2.shape == (B2, D_out)
    np.testing.assert_allclose(np.asarray(out2).sum(-1), np.ones(B2), rtol=0, atol=1e-5)
    np.testing.assert_allclose(np.asarray(out2), np.asarray(ref2), rtol=1e-2, atol=1e-3)

    # --- bf16 MXU-operand path (v6e/v7x serving): softmax stays f32, so rows
    #     still normalize exactly; looser closeness check vs. the f32 reference.
    prep_bf16 = prepare_params(params, compute_dtype=jnp.bfloat16)
    out3 = jax.block_until_ready(dqn_forward(x2, prep_bf16))
    assert out3.shape == (B2, D_out)
    assert np.isfinite(np.asarray(out3)).all()
    np.testing.assert_allclose(np.asarray(out3).sum(-1), np.ones(B2), rtol=0, atol=1e-3)
    np.testing.assert_allclose(np.asarray(out3), np.asarray(ref2), rtol=5e-2, atol=5e-3)

    print("KERNEL_OK")
</pallas_src>

<mosaic_0001>
module attributes {stable_mosaic.version = 11 : i64} {
  func.func @dqn_kernel(%arg0: i32, %arg1: memref<8x32xf32, #tpu.memory_space<vmem>>, %arg2: memref<32x128xf32, #tpu.memory_space<vmem>>, %arg3: memref<1x128xf32, #tpu.memory_space<vmem>>, %arg4: memref<128x128xf32, #tpu.memory_space<vmem>>, %arg5: memref<1x128xf32, #tpu.memory_space<vmem>>, %arg6: memref<128x4xf32, #tpu.memory_space<vmem>>, %arg7: memref<1x4xf32, #tpu.memory_space<vmem>>, %arg8: memref<8x4xf32, #tpu.memory_space<vmem>>) attributes {dimension_semantics = [#tpu.dimension_semantics<parallel>], iteration_bounds = array<i64: 1>, scalar_prefetch = 0 : i64, scratch_operands = 0 : i64, tpu.core_type = #tpu.core_type<tc>, window_params = [{transform_indices = @transform_0, window_bounds = array<i64: 8, 32>}, {pipeline_mode = #tpu.pipeline_mode<synchronous>, transform_indices = @transform_1, window_bounds = array<i64: 32, 128>}, {pipeline_mode = #tpu.pipeline_mode<synchronous>, transform_indices = @transform_2, window_bounds = array<i64: 1, 128>}, {pipeline_mode = #tpu.pipeline_mode<synchronous>, transform_indices = @transform_3, window_bounds = array<i64: 128, 128>}, {pipeline_mode = #tpu.pipeline_mode<synchronous>, transform_indices = @transform_4, window_bounds = array<i64: 1, 128>}, {pipeline_mode = #tpu.pipeline_mode<synchronous>, transform_indices = @transform_5, window_bounds = array<i64: 128, 4>}, {pipeline_mode = #tpu.pipeline_mode<synchronous>, transform_indices = @transform_6, window_bounds = array<i64: 1, 4>}, {transform_indices = @transform_7, window_bounds = array<i64: 8, 4>}]} {
    %c0 = arith.constant 0 : index
    %c0_0 = arith.constant 0 : index
    %0 = vector.load %arg1[%c0, %c0_0] : memref<8x32xf32, #tpu.memory_space<vmem>>, vector<8x32xf32>
    %c0_1 = arith.constant 0 : index
    %c0_2 = arith.constant 0 : index
    %1 = vector.load %arg2[%c0_1, %c0_2] : memref<32x128xf32, #tpu.memory_space<vmem>>, vector<32x128xf32>
    %cst = arith.constant dense<0.000000e+00> : vector<8x128xf32>
    %2 = tpu.matmul %0, %1, %cst {dimension_numbers = #tpu.dot_dimension_numbers<[1], [0], [0], [1], [0, 0, 1, 1], [], []>} : vector<8x32xf32>, vector<32x128xf32>, vector<8x128xf32> -> vector<8x128xf32>
    %c0_3 = arith.constant 0 : index
    %c0_4 = arith.constant 0 : index
    %3 = vector.load %arg3[%c0_3, %c0_4] : memref<1x128xf32, #tpu.memory_space<vmem>>, vector<1x128xf32>
    %4 = vector.broadcast %3 : vector<1x128xf32> to vector<8x128xf32>
    %5 = arith.addf %2, %4 : vector<8x128xf32>
    %cst_5 = arith.constant 0.000000e+00 : f32
    %6 = vector.broadcast %cst_5 : f32 to vector<8x128xf32>
    %7 = arith.maximumf %5, %6 : vector<8x128xf32>
    %c0_6 = arith.constant 0 : index
    %c0_7 = arith.constant 0 : index
    %8 = vector.load %arg4[%c0_6, %c0_7] : memref<128x128xf32, #tpu.memory_space<vmem>>, vector<128x128xf32>
    %cst_8 = arith.constant dense<0.000000e+00> : vector<8x128xf32>
    %9 = tpu.matmul %7, %8, %cst_8 {dimension_numbers = #tpu.dot_dimension_numbers<[1], [0], [0], [1], [0, 0, 1, 1], [], []>} : vector<8x128xf32>, vector<128x128xf32>, vector<8x128xf32> -> vector<8x128xf32>
    %c0_9 = arith.constant 0 : index
    %c0_10 = arith.constant 0 : index
    %10 = vector.load %arg5[%c0_9, %c0_10] : memref<1x128xf32, #tpu.memory_space<vmem>>, vector<1x128xf32>
    %11 = vector.broadcast %10 : vector<1x128xf32> to vector<8x128xf32>
    %12 = arith.addf %9, %11 : vector<8x128xf32>
    %cst_11 = arith.constant 0.000000e+00 : f32
    %13 = vector.broadcast %cst_11 : f32 to vector<8x128xf32>
    %14 = arith.maximumf %12, %13 : vector<8x128xf32>
    %c0_12 = arith.constant 0 : index
    %c0_13 = arith.constant 0 : index
    %15 = vector.load %arg6[%c0_12, %c0_13] : memref<128x4xf32, #tpu.memory_space<vmem>>, vector<128x4xf32>
    %cst_14 = arith.constant dense<0.000000e+00> : vector<8x4xf32>
    %16 = tpu.matmul %14, %15, %cst_14 {dimension_numbers = #tpu.dot_dimension_numbers<[1], [0], [0], [1], [0, 0, 1, 1], [], []>} : vector<8x128xf32>, vector<128x4xf32>, vector<8x4xf32> -> vector<8x4xf32>
    %c0_15 = arith.constant 0 : index
    %c0_16 = arith.constant 0 : index
    %17 = vector.load %arg7[%c0_15, %c0_16] : memref<1x4xf32, #tpu.memory_space<vmem>>, vector<1x4xf32>
    %18 = vector.broadcast %17 : vector<1x4xf32> to vector<8x4xf32>
    %19 = arith.addf %16, %18 : vector<8x4xf32>
    %cst_17 = arith.constant dense<0xFF800000> : vector<8xf32>
    %20 = vector.multi_reduction <maximumf>, %19, %cst_17 [1] : vector<8x4xf32> to vector<8xf32>
    %21 = vector.shape_cast %20 : vector<8xf32> to vector<8x1xf32>
    %22 = vector.broadcast %21 : vector<8x1xf32> to vector<8x4xf32>
    %23 = arith.subf %19, %22 : vector<8x4xf32>
    %24 = math.exp %23 : vector<8x4xf32>
    %cst_18 = arith.constant dense<0.000000e+00> : vector<8xf32>
    %25 = vector.multi_reduction <add>, %24, %cst_18 [1] : vector<8x4xf32> to vector<8xf32>
    %26 = vector.shape_cast %25 : vector<8xf32> to vector<8x1xf32>
    %27 = vector.broadcast %26 : vector<8x1xf32> to vector<8x4xf32>
    %28 = arith.divf %24, %27 : vector<8x4xf32>
    %c0_19 = arith.constant 0 : index
    %c0_20 = arith.constant 0 : index
    %29 = vector.load %arg8[%c0_19, %c0_20] : memref<8x4xf32, #tpu.memory_space<vmem>>, vector<8x4xf32>
    tpu.vector_store %arg8[%c0_19, %c0_20], %28 {strides = array<i32>} : memref<8x4xf32, #tpu.memory_space<vmem>>, vector<8x4xf32>,
    return
  }
  func.func @transform_0(%arg0: i32) -> (i32, i32) {
    %c0_i32 = arith.constant 0 : i32
    %c0_i32_0 = arith.constant 0 : i32
    return %arg0, %c0_i32 : i32, i32
  }
  func.func @transform_1(%arg0: i32) -> (i32, i32) {
    %c0_i32 = arith.constant 0 : i32
    %c0_i32_0 = arith.constant 0 : i32
    %c0_i32_1 = arith.constant 0 : i32
    return %c0_i32, %c0_i32_0 : i32, i32
  }
  func.func @transform_2(%arg0: i32) -> (i32, i32) {
    %c0_i32 = arith.constant 0 : i32
    %c0_i32_0 = arith.constant 0 : i32
    %c0_i32_1 = arith.constant 0 : i32
    return %c0_i32, %c0_i32_0 : i32, i32
  }
  func.func @transform_3(%arg0: i32) -> (i32, i32) {
    %c0_i32 = arith.constant 0 : i32
    %c0_i32_0 = arith.constant 0 : i32
    %c0_i32_1 = arith.constant 0 : i32
    return %c0_i32, %c0_i32_0 : i32, i32
  }
  func.func @transform_4(%arg0: i32) -> (i32, i32) {
    %c0_i32 = arith.constant 0 : i32
    %c0_i32_0 = arith.constant 0 : i32
    %c0_i32_1 = arith.constant 0 : i32
    return %c0_i32, %c0_i32_0 : i32, i32
  }
  func.func @transform_5(%arg0: i32) -> (i32, i32) {
    %c0_i32 = arith.constant 0 : i32
    %c0_i32_0 = arith.constant 0 : i32
    %c0_i32_1 = arith.constant 0 : i32
    return %c0_i32, %c0_i32_0 : i32, i32
  }
  func.func @transform_6(%arg0: i32) -> (i32, i32) {
    %c0_i32 = arith.constant 0 : i32
    %c0_i32_0 = arith.constant 0 : i32
    %c0_i32_1 = arith.constant 0 : i32
    return %c0_i32, %c0_i32_0 : i32, i32
  }
  func.func @transform_7(%arg0: i32) -> (i32, i32) {
    %c0_i32 = arith.constant 0 : i32
    %c0_i32_0 = arith.constant 0 : i32
    return %arg0, %c0_i32 : i32, i32
  }
}

</mosaic_0001>

<llo_original>
// kernel: tpu_custom_call.1
$region0: #{tpu_custom_call.1}
  #allocation0 [shape = 'u32[]', space=smem, size = 0x4, offset = 0x4, fixed_abs, tag = 'smem constant byte address 0x4 - core index']
  #allocation1 [shape = 'u32[144,128]{1,0:T(1,128)}', space=vmem, size = 0x12000, scoped, tag = 'internal scratch']
  %s0 = inlined_call_operand.vmem [shape: f32[8,32], index: 0, kind: input, shape index: {}]
  %s1 = inlined_call_operand.hbm [shape: f32[32,128], index: 1, kind: input, shape index: {}]
  %s2 = inlined_call_operand.vmem [shape: f32[1,128], index: 2, kind: input, shape index: {}]
  %s3 = inlined_call_operand.vmem [shape: f32[128,128], index: 3, kind: input, shape index: {}]
  %s4 = inlined_call_operand.vmem [shape: f32[1,128], index: 4, kind: input, shape index: {}]
  %s5 = inlined_call_operand.vmem [shape: f32[128,4], index: 5, kind: input, shape index: {}]
  %s6 = inlined_call_operand.vmem [shape: f32[1,4], index: 6, kind: input, shape index: {}]
  %s7 = inlined_call_operand.vmem [shape: f32[8,4], index: 7, kind: output, shape index: {}]
  %s8 = sld [smem:[#allocation0]]
  $region42: #{tpu_custom_call.1} parent=0
    _
  %s10 = ssub.s32 1, %s8
  %s11 = scalar_select 0, %s10, %s8
  $region1: #{tpu_custom_call.1} parent=0
    #allocation2 [shape = 'u8[16384]{0}', space=vmem, size = 0x4000, scoped, tag = 'input window, operand 1, single buffered']
    #allocation3 [shape = 's32[1]{0}', space=sflag, size = 0x4, scoped, tag = 'scoped memory for tpu_custom_call.1']
    %12 = vsyncpa [#allocation3], 0
    // Predicated region
    $region2: #{tpu_custom_call.1} parent=1 // pred_check
      _
    $region3: #{tpu_custom_call.1} parent=1 // pred_check_branch
      %14 = sbr.rel (0) target = $region5
    $region4: #{tpu_custom_call.1} parent=1 // pred_region
      _
    $region5: #{tpu_custom_call.1} parent=1 // pred_fallthru
      _
    // Predicated region
    $region6: #{tpu_custom_call.1} parent=1 // pred_check
      _
    $region7: #{tpu_custom_call.1} parent=1 // pred_check_branch
      %16 = sbr.rel (0) target = $region9
    $region8: #{tpu_custom_call.1} parent=1 // pred_region
      %s18 = ssub.s32 512, 512
      %19 = vsyncadd [#allocation3], %s18
      %s20 = sshll.u32 [#allocation2], 4
      %s21 = int_to_ptr.vmem [resolvable:$true] %s20
      %26 = dma.hbm_to_vmem [thread:$0]  %s1, 512, %s21, [#allocation3], 128, 128, 8
    $region9: #{tpu_custom_call.1} parent=1 // pred_fallthru
      _
    // Predicated region
    $region10: #{tpu_custom_call.1} parent=1 // pred_check
      _
    $region11: #{tpu_custom_call.1} parent=1 // pred_check_branch
      %28 = sbr.rel (0) target = $region13
    $region12: #{tpu_custom_call.1} parent=1 // pred_region
      _
    $region13: #{tpu_custom_call.1} parent=1 // pred_fallthru
      _
    // Predicated region
    $region14: #{tpu_custom_call.1} parent=1 // pred_check
      _
    $region15: #{tpu_custom_call.1} parent=1 // pred_check_branch
      %30 = sbr.rel (0) target = $region17
    $region16: #{tpu_custom_call.1} parent=1 // pred_region
      _
    $region17: #{tpu_custom_call.1} parent=1 // pred_fallthru
      _
    // Predicated region
    $region18: #{tpu_custom_call.1} parent=1 // pred_check
      _
    $region19: #{tpu_custom_call.1} parent=1 // pred_check_branch
      %32 = sbr.rel (0) target = $region21
    $region20: #{tpu_custom_call.1} parent=1 // pred_region
      _
    $region21: #{tpu_custom_call.1} parent=1 // pred_fallthru
      _
    // Predicated region
    $region22: #{tpu_custom_call.1} parent=1 // pred_check
      _
    $region23: #{tpu_custom_call.1} parent=1 // pred_check_branch
      %34 = sbr.rel (0) target = $region25
    $region24: #{tpu_custom_call.1} parent=1 // pred_region
      _
    $region25: #{tpu_custom_call.1} parent=1 // pred_fallthru
      _
    // Predicated region
    $region26: #{tpu_custom_call.1} parent=1 // pred_check
      _
    $region27: #{tpu_custom_call.1} parent=1 // pred_check_branch
      %36 = sbr.rel (0) target = $region29
    $region28: #{tpu_custom_call.1} parent=1 // pred_region
      _
    $region29: #{tpu_custom_call.1} parent=1 // pred_fallthru
      _
    // Predicated region
    $region30: #{tpu_custom_call.1} parent=1 // pred_check
      _
    $region31: #{tpu_custom_call.1} parent=1 // pred_check_branch
      %38 = sbr.rel (0) target = $region33
    $region32: #{tpu_custom_call.1} parent=1 // pred_region
      %39 = dma.done [#allocation3], 512
    $region33: #{tpu_custom_call.1} parent=1 // pred_fallthru
      _
    %v40 = vld [vmem:[%s0] sm:$0xff]
    %v41 = vld [vmem:[#allocation2] sm:$0xff]
    %v42 = vld [vmem:[#allocation2 + $0x8] sm:$0xff]
    %v43 = vld [vmem:[#allocation2 + $0x10] sm:$0xff]
    %v44 = vld [vmem:[#allocation2 + $0x18] sm:$0xff]
    %v45 = vld [vmem:[%s2] sm:$0x1]
    %v47 = vlaneseq
    %v48 = vshrl.u32 %v47, 7
    %v49 = vsub.s32 0, %v48
    %v50 = vrot.slane %v45, %v49
    %vm52 = vcmask 261120
    %v54 = vsel %vm52, %v40, 0
    %56 = vmatprep.subr.mxu0 0.0
    %57 = vmatpush1.msra.mxu0 %v41
    %58 = vmatprep.subr.mxu0 0.0
    %59 = vmatpush1.msra.mxu0 %v42
    %60 = vmatprep.subr.mxu0 0.0
    %61 = vmatpush1.msra.mxu0 %v43
    %62 = vmatprep.subr.mxu0 0.0
    %63 = vmatpush1.msra.mxu0 %v44
    %64 = vmatprep.subr.mxu0 0.0
    %65 = vmatpush1.msra.mxu0 0.0
    %66 = vmatprep.subr.mxu0 0.0
    %67 = vmatpush1.msra.mxu0 0.0
    %68 = vmatprep.subr.mxu0 0.0
    %69 = vmatpush1.msra.mxu0 0.0
    %70 = vmatprep.subr.mxu0 0.0
    %71 = vmatpush1.msra.mxu0 0.0
    %72 = vmatprep.subr.mxu0 0.0
    %73 = vmatpush1.msra.mxu0 0.0
    %74 = vmatprep.subr.mxu0 0.0
    %75 = vmatpush1.msra.mxu0 0.0
    %76 = vmatprep.subr.mxu0 0.0
    %77 = vmatpush1.msra.mxu0 0.0
    %78 = vmatprep.subr.mxu0 0.0
    %79 = vmatpush1.msra.mxu0 0.0
    %80 = vmatprep.subr.mxu0 0.0
    %81 = vmatpush1.msra.mxu0 0.0
    %82 = vmatprep.subr.mxu0 0.0
    %83 = vmatpush1.msra.mxu0 0.0
    %84 = vmatprep.subr.mxu0 0.0
    %85 = vmatpush1.msra.mxu0 0.0
    %86 = vmatprep.subr.mxu0 0.0
    %87 = vmatpush1.msra.mxu0 0.0
    %88 = vmatprep.subr.mxu0 0.0
    %89 = vmatpush1.msra.mxu0 0.0
    %90 = vmatprep.subr.mxu0 0.0
    %91 = vmatpush1.msra.mxu0 0.0
    %92 = vmatprep.subr.mxu0 0.0
    %93 = vmatpush1.msra.mxu0 0.0
    %94 = vmatprep.subr.mxu0 0.0
    %95 = vmatpush1.msra.mxu0 0.0
    %96 = vmatprep.subr.mxu0 0.0
    %97 = vmatpush1.msra.mxu0 0.0
    %98 = vmatprep.subr.mxu0 0.0
    %99 = vmatpush1.msra.mxu0 0.0
    %100 = vmatprep.subr.mxu0 0.0
    %101 = vmatpush1.msra.mxu0 0.0
    %102 = vmatprep.subr.mxu0 0.0
    %103 = vmatpush1.msra.mxu0 0.0
    %104 = vmatprep.subr.mxu0 0.0
    %105 = vmatpush1.msra.mxu0 0.0
    %106 = vmatprep.subr.mxu0 0.0
    %107 = vmatpush1.msra.mxu0 0.0
    %108 = vmatprep.subr.mxu0 0.0
    %109 = vmatpush1.msra.mxu0 0.0
    %110 = vmatprep.subr.mxu0 0.0
    %111 = vmatpush1.msra.mxu0 0.0
    %112 = vmatprep.subr.mxu0 0.0
    %113 = vmatpush1.msra.mxu0 0.0
    %114 = vmatprep.subr.mxu0 0.0
    %115 = vmatpush1.msra.mxu0 0.0
    %116 = vmatprep.subr.mxu0 0.0
    %117 = vmatpush1.msra.mxu0 0.0
    %118 = vmatprep.subr.mxu0 0.0
    %119 = vmatpush1.msra.mxu0 0.0
    %120 = vmatprep.mubr.f32.mxu0 0.0
    %121 = vmatmul.mubr.f32.gmra.mrb[0].mxu0 %v54
    %v122 = vpop.f32.mrb[0].mxu0
    %v123 = vadd.f32 %v50, %v122
    %v124 = vpop.f32.mrb[0].mxu0
    %125 = vdwg.mxu0
    %v126 = vmax.f32 %v123, 0.0
    %v127 = vld [vmem:[%s3] sm:$0xff]
    %v128 = vld [vmem:[%s3 + $0x8] sm:$0xff]
    %v129 = vld [vmem:[%s3 + $0x10] sm:$0xff]
    %v130 = vld [vmem:[%s3 + $0x18] sm:$0xff]
    %v131 = vld [vmem:[%s3 + $0x20] sm:$0xff]
    %v132 = vld [vmem:[%s3 + $0x28] sm:$0xff]
    %v133 = vld [vmem:[%s3 + $0x30] sm:$0xff]
    %v134 = vld [vmem:[%s3 + $0x38] sm:$0xff]
    %v135 = vld [vmem:[%s3 + $0x40] sm:$0xff]
    %v136 = vld [vmem:[%s3 + $0x48] sm:$0xff]
    %v137 = vld [vmem:[%s3 + $0x50] sm:$0xff]
    %v138 = vld [vmem:[%s3 + $0x58] sm:$0xff]
    %v139 = vld [vmem:[%s3 + $0x60] sm:$0xff]
    %v140 = vld [vmem:[%s3 + $0x68] sm:$0xff]
    %v141 = vld [vmem:[%s3 + $0x70] sm:$0xff]
    %v142 = vld [vmem:[%s3 + $0x78] sm:$0xff]
    %v143 = vld [vmem:[%s4] sm:$0x1]
    %v145 = vlaneseq
    %v146 = vshrl.u32 %v145, 7
    %v147 = vsub.s32 0, %v146
    %v148 = vrot.slane %v143, %v147
    %150 = vmatprep.subr.mxu0 0.0
    %151 = vmatpush1.msra.mxu0 %v127
    %152 = vmatprep.subr.mxu0 0.0
    %153 = vmatpush1.msra.mxu0 %v128
    %154 = vmatprep.subr.mxu0 0.0
    %155 = vmatpush1.msra.mxu0 %v129
    %156 = vmatprep.subr.mxu0 0.0
    %157 = vmatpush1.msra.mxu0 %v130
    %158 = vmatprep.subr.mxu0 0.0
    %159 = vmatpush1.msra.mxu0 %v131
    %160 = vmatprep.subr.mxu0 0.0
    %161 = vmatpush1.msra.mxu0 %v132
    %162 = vmatprep.subr.mxu0 0.0
    %163 = vmatpush1.msra.mxu0 %v133
    %164 = vmatprep.subr.mxu0 0.0
    %165 = vmatpush1.msra.mxu0 %v134
    %166 = vmatprep.subr.mxu0 0.0
    %167 = vmatpush1.msra.mxu0 %v135
    %168 = vmatprep.subr.mxu0 0.0
    %169 = vmatpush1.msra.mxu0 %v136
    %170 = vmatprep.subr.mxu0 0.0
    %171 = vmatpush1.msra.mxu0 %v137
    %172 = vmatprep.subr.mxu0 0.0
    %173 = vmatpush1.msra.mxu0 %v138
    %174 = vmatprep.subr.mxu0 0.0
    %175 = vmatpush1.msra.mxu0 %v139
    %176 = vmatprep.subr.mxu0 0.0
    %177 = vmatpush1.msra.mxu0 %v140
    %178 = vmatprep.subr.mxu0 0.0
    %179 = vmatpush1.msra.mxu0 %v141
    %180 = vmatprep.subr.mxu0 0.0
    %181 = vmatpush1.msra.mxu0 %v142
    %182 = vmatprep.subr.mxu0 0.0
    %183 = vmatpush1.msra.mxu0 0.0
    %184 = vmatprep.subr.mxu0 0.0
    %185 = vmatpush1.msra.mxu0 0.0
    %186 = vmatprep.subr.mxu0 0.0
    %187 = vmatpush1.msra.mxu0 0.0
    %188 = vmatprep.subr.mxu0 0.0
    %189 = vmatpush1.msra.mxu0 0.0
    %190 = vmatprep.subr.mxu0 0.0
    %191 = vmatpush1.msra.mxu0 0.0
    %192 = vmatprep.subr.mxu0 0.0
    %193 = vmatpush1.msra.mxu0 0.0
    %194 = vmatprep.subr.mxu0 0.0
    %195 = vmatpush1.msra.mxu0 0.0
    %196 = vmatprep.subr.mxu0 0.0
    %197 = vmatpush1.msra.mxu0 0.0
    %198 = vmatprep.subr.mxu0 0.0
    %199 = vmatpush1.msra.mxu0 0.0
    %200 = vmatprep.subr.mxu0 0.0
    %201 = vmatpush1.msra.mxu0 0.0
    %202 = vmatprep.subr.mxu0 0.0
    %203 = vmatpush1.msra.mxu0 0.0
    %204 = vmatprep.subr.mxu0 0.0
    %205 = vmatpush1.msra.mxu0 0.0
    %206 = vmatprep.subr.mxu0 0.0
    %207 = vmatpush1.msra.mxu0 0.0
    %208 = vmatprep.subr.mxu0 0.0
    %209 = vmatpush1.msra.mxu0 0.0
    %210 = vmatprep.subr.mxu0 0.0
    %211 = vmatpush1.msra.mxu0 0.0
    %212 = vmatprep.subr.mxu0 0.0
    %213 = vmatpush1.msra.mxu0 0.0
    %214 = vmatprep.mubr.f32.mxu0 0.0
    %215 = vmatmul.mubr.f32.gmra.mrb[0].mxu0 %v126
    %v216 = vpop.f32.mrb[0].mxu0
    %v217 = vadd.f32 %v148, %v216
    %v218 = vpop.f32.mrb[0].mxu0
    %219 = vdwg.mxu0
    %v220 = vmax.f32 %v217, 0.0
    %v221 = vld [vmem:[%s5] sm:$0xff]
    %v222 = vld [vmem:[%s5 + $0x8] sm:$0xff]
    %v223 = vld [vmem:[%s5 + $0x10] sm:$0xff]
    %v224 = vld [vmem:[%s5 + $0x18] sm:$0xff]
    %v225 = vld [vmem:[%s5 + $0x20] sm:$0xff]
    %v226 = vld [vmem:[%s5 + $0x28] sm:$0xff]
    %v227 = vld [vmem:[%s5 + $0x30] sm:$0xff]
    %v228 = vld [vmem:[%s5 + $0x38] sm:$0xff]
    %v229 = vld [vmem:[%s5 + $0x40] sm:$0xff]
    %v230 = vld [vmem:[%s5 + $0x48] sm:$0xff]
    %v231 = vld [vmem:[%s5 + $0x50] sm:$0xff]
    %v232 = vld [vmem:[%s5 + $0x58] sm:$0xff]
    %v233 = vld [vmem:[%s5 + $0x60] sm:$0xff]
    %v234 = vld [vmem:[%s5 + $0x68] sm:$0xff]
    %v235 = vld [vmem:[%s5 + $0x70] sm:$0xff]
    %v236 = vld [vmem:[%s5 + $0x78] sm:$0xff]
    %v237 = vld [vmem:[%s6] sm:$0x1]
    %v239 = vlaneseq
    %v240 = vshrl.u32 %v239, 7
    %v241 = vsub.s32 0, %v240
    %v242 = vrot.slane %v237, %v241
    %244 = vmatprep.subr.mxu0 0.0
    %245 = vmatpush1.msra.mxu0 %v221
    %246 = vmatprep.subr.mxu0 0.0
    %247 = vmatpush1.msra.mxu0 %v222
    %248 = vmatprep.subr.mxu0 0.0
    %249 = vmatpush1.msra.mxu0 %v223
    %250 = vmatprep.subr.mxu0 0.0
    %251 = vmatpush1.msra.mxu0 %v224
    %252 = vmatprep.subr.mxu0 0.0
    %253 = vmatpush1.msra.mxu0 %v225
    %254 = vmatprep.subr.mxu0 0.0
    %255 = vmatpush1.msra.mxu0 %v226
    %256 = vmatprep.subr.mxu0 0.0
    %257 = vmatpush1.msra.mxu0 %v227
    %258 = vmatprep.subr.mxu0 0.0
    %259 = vmatpush1.msra.mxu0 %v228
    %260 = vmatprep.subr.mxu0 0.0
    %261 = vmatpush1.msra.mxu0 %v229
    %262 = vmatprep.subr.mxu0 0.0
    %263 = vmatpush1.msra.mxu0 %v230
    %264 = vmatprep.subr.mxu0 0.0
    %265 = vmatpush1.msra.mxu0 %v231
    %266 = vmatprep.subr.mxu0 0.0
    %267 = vmatpush1.msra.mxu0 %v232
    %268 = vmatprep.subr.mxu0 0.0
    %269 = vmatpush1.msra.mxu0 %v233
    %270 = vmatprep.subr.mxu0 0.0
    %271 = vmatpush1.msra.mxu0 %v234
    %272 = vmatprep.subr.mxu0 0.0
    %273 = vmatpush1.msra.mxu0 %v235
    %274 = vmatprep.subr.mxu0 0.0
    %275 = vmatpush1.msra.mxu0 %v236
    %276 = vmatprep.subr.mxu0 0.0
    %277 = vmatpush1.msra.mxu0 0.0
    %278 = vmatprep.subr.mxu0 0.0
    %279 = vmatpush1.msra.mxu0 0.0
    %280 = vmatprep.subr.mxu0 0.0
    %281 = vmatpush1.msra.mxu0 0.0
    %282 = vmatprep.subr.mxu0 0.0
    %283 = vmatpush1.msra.mxu0 0.0
    %284 = vmatprep.subr.mxu0 0.0
    %285 = vmatpush1.msra.mxu0 0.0
    %286 = vmatprep.subr.mxu0 0.0
    %287 = vmatpush1.msra.mxu0 0.0
    %288 = vmatprep.subr.mxu0 0.0
    %289 = vmatpush1.msra.mxu0 0.0
    %290 = vmatprep.subr.mxu0 0.0
    %291 = vmatpush1.msra.mxu0 0.0
    %292 = vmatprep.subr.mxu0 0.0
    %293 = vmatpush1.msra.mxu0 0.0
    %294 = vmatprep.subr.mxu0 0.0
    %295 = vmatpush1.msra.mxu0 0.0
    %296 = vmatprep.subr.mxu0 0.0
    %297 = vmatpush1.msra.mxu0 0.0
    %298 = vmatprep.subr.mxu0 0.0
    %299 = vmatpush1.msra.mxu0 0.0
    %300 = vmatprep.subr.mxu0 0.0
    %301 = vmatpush1.msra.mxu0 0.0
    %302 = vmatprep.subr.mxu0 0.0
    %303 = vmatpush1.msra.mxu0 0.0
    %304 = vmatprep.subr.mxu0 0.0
    %305 = vmatpush1.msra.mxu0 0.0
    %306 = vmatprep.subr.mxu0 0.0
    %307 = vmatpush1.msra.mxu0 0.0
    %308 = vmatprep.mubr.f32.mxu0 0.0
    %309 = vmatmul.mubr.f32.gmra.mrb[0].mxu0 %v220
    %v310 = vpop.f32.mrb[0].mxu0
    %v311 = vadd.f32 %v242, %v310
    %v312 = vpop.f32.mrb[0].mxu0
    %313 = vdwg.mxu0
    %vm314 = vcmask 31744
    %v315 = vsel %vm314, %v311, -inf
    %316 = vmax.xlane.f32.xlu0 %v315
    %v317 = vpop.xlane.xlu0 %316
    %v318 = vsub.f32 %v311, %v317
    %v319 = vmul.f32 %v318, 1.442695
    %v320 = vpow.pop %v319
    %v321 = vsel %vm314, %v320, 0.0
    %322 = vadd.xlane.f32.xlu0 %v321
    %v323 = vpop.xlane.xlu0 %322
    %v324 = vrcp.pop %v323
    %v325 = vmul.f32 %v320, %v324
    %326 = vst.msk [vmem:[%s7] sm:$0xff] %vm314, %v325
    // Predicated region
    $region34: #{tpu_custom_call.1} parent=1 // pred_check
      _
    $region35: #{tpu_custom_call.1} parent=1 // pred_check_branch
      %328 = sbr.rel (0) target = $region37
    $region36: #{tpu_custom_call.1} parent=1 // pred_region
      _
    $region37: #{tpu_custom_call.1} parent=1 // pred_fallthru
      _
    // Predicated region
    $region38: #{tpu_custom_call.1} parent=1 // pred_check
      _
    $region39: #{tpu_custom_call.1} parent=1 // pred_check_branch
      %330 = sbr.rel (0) target = $region41
    $region40: #{tpu_custom_call.1} parent=1 // pred_region
      _
    $region41: #{tpu_custom_call.1} parent=1 // pred_fallthru
      _
    %331 = vsyncpa [#allocation3], 1

</llo_original>
